<compile_context>
chip_gen: v6e
topology: v6e:2x2x1
jax: 0.10.0
libtpu: 0.0.40
codegen_flags: <defaults>
</compile_context>

<pallas_src>
import jax
import jax.numpy as jnp
from jax.experimental import pallas as pl
from jax.experimental.pallas import tpu as pltpu


def _reshape_input_kernel(x_ref, o_ref):
    """One batch element: (1, 8, H, W) -> (1, 1, 4H, 2W) with one lane-dense store."""
    x = x_ref[0]                                    # (8, H, W), resident in VMEM
    _, h, w = x.shape
    left = x[0:4].reshape(4 * h, w)                 # channels 0..3 stacked along rows
    right = x[4:8].reshape(4 * h, w)                # channels 4..7 stacked along rows
    o_ref[0, 0] = jnp.concatenate([left, right], axis=-1)   # (4H, 2W): single store


def reshape_input(x):
    """Pallas version of ReshapeInput.forward.  x: (N, H, W, 8) -> (N, 1, 4H, 2W)."""
    n, h, w, c = x.shape
    assert c == 8, "ReshapeInput expects exactly 8 EEG channels on the last axis"
    # Channel-major layout at the boundary (tiny XLA transpose) so the kernel's
    # mosaic assembly is sublane/lane friendly and the store is unmasked.
    x_cmajor = jnp.transpose(x, (0, 3, 1, 2))       # (N, 8, H, W)
    return pl.pallas_call(
        _reshape_input_kernel,
        out_shape=jax.ShapeDtypeStruct((n, 1, 4 * h, 2 * w), x.dtype),
        grid=(n,),
        in_specs=[pl.BlockSpec((1, c, h, w), lambda i: (i, 0, 0, 0))],
        out_specs=pl.BlockSpec((1, 1, 4 * h, 2 * w), lambda i: (i, 0, 0, 0)),
        compiler_params=pltpu.CompilerParams(
            dimension_semantics=("parallel",)),     # v7x: shard batch over both TCs
    )(x_cmajor)


def eegnet_forward(x):
    """EEGNet.forward.  Returns the reshaped single-channel image batch."""
    x = reshape_input(x)
    # TODO(synk): x = timm_backbone(x)  (external/unspecified model, see header).
    return x


# Pure-JAX transcription of the PyTorch ReshapeInput, used only to verify the kernel.
def _reshape_input_reference(x):
    chans = [x[:, :, :, i:i + 1] for i in range(8)]
    x1 = jnp.concatenate(chans[:4], axis=1)
    x2 = jnp.concatenate(chans[4:], axis=1)
    x3 = jnp.concatenate([x1, x2], axis=2)
    return jnp.transpose(x3, (0, 3, 1, 2))


if __name__ == "__main__":
    key = jax.random.PRNGKey(0)
    # EEG spectrogram batch (N, H, W, channels) = (2, 16, 64, 8)
    # -> mosaic image (2, 1, 64, 128): 4H = 64 rows, 2W = 128 lane-dense columns.
    x = jax.random.normal(key, (2, 16, 64, 8), jnp.float32)

    fwd = jax.jit(eegnet_forward)
    out = jax.block_until_ready(fwd(x))

    assert out.shape == (2, 1, 64, 128), out.shape
    assert bool(jnp.all(jnp.isfinite(out)))
    ref = _reshape_input_reference(x)
    assert bool(jnp.allclose(out, ref)), float(jnp.max(jnp.abs(out - ref)))
    print("KERNEL_OK")
</pallas_src>

<mosaic_0001>
module attributes {stable_mosaic.version = 11 : i64} {
  func.func @_reshape_input_kernel(%arg0: i32, %arg1: memref<1x8x16x64xf32, #tpu.memory_space<vmem>>, %arg2: memref<1x1x64x128xf32, #tpu.memory_space<vmem>>) attributes {dimension_semantics = [#tpu.dimension_semantics<parallel>], iteration_bounds = array<i64: 2>, scalar_prefetch = 0 : i64, scratch_operands = 0 : i64, tpu.core_type = #tpu.core_type<tc>, window_params = [{transform_indices = @transform_0, window_bounds = array<i64: 1, 8, 16, 64>}, {transform_indices = @transform_1, window_bounds = array<i64: 1, 1, 64, 128>}]} {
    %c0 = arith.constant 0 : index
    %c0_0 = arith.constant 0 : index
    %c0_1 = arith.constant 0 : index
    %c0_2 = arith.constant 0 : index
    %0 = vector.load %arg1[%c0, %c0_0, %c0_1, %c0_2] : memref<1x8x16x64xf32, #tpu.memory_space<vmem>>, vector<1x8x16x64xf32>
    %1 = vector.shape_cast %0 : vector<1x8x16x64xf32> to vector<8x16x64xf32>
    %2 = vector.extract_strided_slice %1 {offsets = [0, 0, 0], sizes = [4, 16, 64], strides = [1, 1, 1]} : vector<8x16x64xf32> to vector<4x16x64xf32>
    %3 = vector.shape_cast %2 : vector<4x16x64xf32> to vector<64x64xf32>
    %4 = vector.extract_strided_slice %1 {offsets = [4, 0, 0], sizes = [4, 16, 64], strides = [1, 1, 1]} : vector<8x16x64xf32> to vector<4x16x64xf32>
    %5 = vector.shape_cast %4 : vector<4x16x64xf32> to vector<64x64xf32>
    %6 = tpu.concatenate %3, %5 in 1 : vector<64x64xf32>, vector<64x64xf32> -> vector<64x128xf32>
    %c0_3 = arith.constant 0 : index
    %c0_4 = arith.constant 0 : index
    %c0_5 = arith.constant 0 : index
    %c0_6 = arith.constant 0 : index
    %7 = vector.load %arg2[%c0_3, %c0_4, %c0_5, %c0_6] : memref<1x1x64x128xf32, #tpu.memory_space<vmem>>, vector<1x1x64x128xf32>
    %8 = vector.shape_cast %7 : vector<1x1x64x128xf32> to vector<64x128xf32>
    %9 = vector.shape_cast %6 : vector<64x128xf32> to vector<1x1x64x128xf32>
    tpu.vector_store %arg2[%c0_3, %c0_4, %c0_5, %c0_6], %9 {strides = array<i32>} : memref<1x1x64x128xf32, #tpu.memory_space<vmem>>, vector<1x1x64x128xf32>,
    return
  }
  func.func @transform_0(%arg0: i32) -> (i32, i32, i32, i32) {
    %c0_i32 = arith.constant 0 : i32
    %c0_i32_0 = arith.constant 0 : i32
    %c0_i32_1 = arith.constant 0 : i32
    %c0_i32_2 = arith.constant 0 : i32
    return %arg0, %c0_i32, %c0_i32_0, %c0_i32_1 : i32, i32, i32, i32
  }
  func.func @transform_1(%arg0: i32) -> (i32, i32, i32, i32) {
    %c0_i32 = arith.constant 0 : i32
    %c0_i32_0 = arith.constant 0 : i32
    %c0_i32_1 = arith.constant 0 : i32
    %c0_i32_2 = arith.constant 0 : i32
    return %arg0, %c0_i32, %c0_i32_0, %c0_i32_1 : i32, i32, i32, i32
  }
}

</mosaic_0001>

<llo_original>
// kernel: eegnet_forward.1
$region0: #{eegnet_forward.1}
  #allocation0 [shape = 'u32[]', space=smem, size = 0x4, offset = 0x4, fixed_abs, tag = 'smem constant byte address 0x4 - core index']
  #allocation1 [shape = 'u32[144,128]{1,0:T(1,128)}', space=vmem, size = 0x12000, scoped, tag = 'internal scratch']
  %s0 = inlined_call_operand.vmem [shape: f32[2,8,16,64], index: 0, kind: input, shape index: {}]
  %s1 = inlined_call_operand.hbm [shape: f32[2,1,64,128], index: 1, kind: output, shape index: {}]
  %s2 = sld [smem:[#allocation0]]
  $region37: #{eegnet_forward.1} parent=0
    _
  %s4 = ssub.s32 1, %s2
  %s5 = scalar_select 0, %s4, %s2
  $region1: #{eegnet_forward.1} parent=0
    #allocation2 [shape = 'u8[65536]{0}', space=vmem, size = 0x10000, scoped, tag = 'output window, operand 0']
    #allocation3 [shape = 's32[2]{0}', space=sflag, size = 0x8, scoped, tag = 'scoped memory for eegnet_forward.1']
    %6 = vsyncpa [#allocation3], 0
    %s7 = scalar_lea.sflag [#allocation3], 1
    %8 = vsyncpa %s7, 0
    loop: start=0, step=1, limit=4
    $region2: #{eegnet_forward.1} parent=1 // loop_pre_header
      _
    $region3: #{eegnet_forward.1} parent=1 // loop_header
      %s10 = sphi 0, %s14
      %p11 = scmp.ge.s32.totalorder %s10, 4
      %s20 = sphi 0, %s22
      %s23 = sphi 0, %s20
      %s24 = sphi 0, %s23
      %s40 = sphi 0, %s24
      %s46 = sphi 0, %s48
      %s49 = sphi 0, %s46
      %s50 = sphi 0, %s49
      %s66 = sphi 0, %s50
    $region4: #{eegnet_forward.1} parent=1 // loop_header_branch
      %13 = sbr.rel (%p11) target = $region8
    $region5: #{eegnet_forward.1} parent=1 // loop_body
      %s15 = ssub.s32 %s10, 1
      %s16 = ssub.s32 %s10, 2
      %s17 = sadd.s32 %s10, 1
      %s18 = ssub.s32 %s10, %s17
      %p19 = scmp.eq.s32.totalorder %s18, 0
      %s21 = sadd.s32 %s20, 1
      %s22 = scalar_select %p19, %s20, %s21
      %p25 = pneg %p19
      %p26 = scmp.eq.s32.totalorder %s10, 1
      %p27 = por %p25, %p26
      %p28 = scmp.ne.s32.totalorder %s20, %s23
      %p29 = scmp.eq.s32.totalorder %s10, 0
      %p30 = por %p28, %p29
      %p31 = scmp.ne.s32.totalorder %s20, %s23
      %p32 = scmp.eq.s32.totalorder %s15, 1
      %p33 = por %p31, %p32
      %p34 = scmp.ne.s32.totalorder %s23, %s24
      %p35 = scmp.eq.s32.totalorder %s15, 0
      %p36 = por %p34, %p35
      %p37 = scmp.ne.s32.totalorder %s23, %s24
      %p38 = scmp.eq.s32.totalorder %s16, 1
      %p39 = por %p37, %p38
      %p41 = scmp.ne.s32.totalorder %s24, %s40
      %p42 = scmp.eq.s32.totalorder %s16, 0
      %p43 = por %p41, %p42
      %s44 = ssub.s32 %s10, %s17
      %p45 = scmp.eq.s32.totalorder %s44, 0
      %s47 = sadd.s32 %s46, 1
      %s48 = scalar_select %p45, %s46, %s47
      %p51 = pneg %p45
      %p52 = scmp.eq.s32.totalorder %s10, 1
      %p53 = por %p51, %p52
      %p54 = scmp.ne.s32.totalorder %s46, %s49
      %p55 = scmp.eq.s32.totalorder %s10, 0
      %p56 = por %p54, %p55
      %p57 = scmp.ne.s32.totalorder %s46, %s49
      %p58 = scmp.eq.s32.totalorder %s15, 1
      %p59 = por %p57, %p58
      %p60 = scmp.ne.s32.totalorder %s49, %s50
      %p61 = scmp.eq.s32.totalorder %s15, 0
      %p62 = por %p60, %p61
      %p63 = scmp.ne.s32.totalorder %s49, %s50
      %p64 = scmp.eq.s32.totalorder %s16, 1
      %p65 = por %p63, %p64
      %p67 = scmp.ne.s32.totalorder %s50, %s66
      %p68 = scmp.eq.s32.totalorder %s16, 0
      %p69 = por %p67, %p68
      %p70 = scmp.le.s32.totalorder 1, %s10
      %p71 = scmp.lt.s32.totalorder %s10, 3
      %p72 = pnand %p70, %p71
      %p73 = pneg %p72
      // Predicated region
      $region9: #{eegnet_forward.1} parent=5 // pred_check
        _
      $region10: #{eegnet_forward.1} parent=5 // pred_check_branch
        %75 = sbr.rel (%p72) target = $region12
      $region11: #{eegnet_forward.1} parent=5 // pred_region
        %s76 = ssub.s32 %s10, 1
      $region12: #{eegnet_forward.1} parent=5 // pred_fallthru
        _
      %p77 = scmp.lt.s32.totalorder %s10, 2
      // Predicated region
      $region13: #{eegnet_forward.1} parent=5 // pred_check
        %p78 = pneg %p77
      $region14: #{eegnet_forward.1} parent=5 // pred_check_branch
        %80 = sbr.rel (%p78) target = $region16
      $region15: #{eegnet_forward.1} parent=5 // pred_region
        // Predicated region
        $region17: #{eegnet_forward.1} parent=15 // pred_check
          %p81 = pneg %p30
        $region18: #{eegnet_forward.1} parent=15 // pred_check_branch
          %83 = sbr.rel (%p81) target = $region20
        $region19: #{eegnet_forward.1} parent=15 // pred_region
          %p84 = scmp.lt.s32.totalorder %s10, 1
          %s85 = scalar_select %p84, %s10, 1
          %s86 = smul.addr %s85, 16
          %s87 = smul.addr %s86, 8
          %s88 = scalar_lea.vmem %s0, %s87
        $region20: #{eegnet_forward.1} parent=15 // pred_fallthru
          _
      $region16: #{eegnet_forward.1} parent=5 // pred_fallthru
        _
      %p89 = scmp.le.s32.totalorder 1, %s10
      %p90 = scmp.lt.s32.totalorder %s10, 3
      %p91 = pnand %p89, %p90
      %p92 = pneg %p91
      // Predicated region
      $region21: #{eegnet_forward.1} parent=5 // pred_check
        _
      $region22: #{eegnet_forward.1} parent=5 // pred_check_branch
        %94 = sbr.rel (%p91) target = $region24
      $region23: #{eegnet_forward.1} parent=5 // pred_region
        %s95 = ssub.s32 %s10, 1
        %p96 = scmp.lt.s32.totalorder %s15, 1
        %s97 = scalar_select %p96, %s15, 1
        %s98 = smul.addr %s97, 16
        %s99 = smul.addr %s98, 8
        %s100 = scalar_lea.vmem %s0, %s99
        %p101 = pneg %p36
        %p102 = pneg %p33
        %p103 = pneg %p62
        %p104 = pneg %p59
        %s105 = sand.u32 %s49, 1
        %s106 = scalar_lea.sflag [#allocation3], %s105
        %s107 = sand.u32 %s49, 1
        %s108 = smul.addr %s107, 64
        %s109 = scalar_lea.vmem [#allocation2], %s108
        %p110 = scmp.lt.s32.totalorder %s15, 1
        %s111 = scalar_select %p110, %s15, 1
        %s112 = smul.addr %s111, 16
        %s113 = smul.addr %s112, 8
        %s114 = scalar_lea.vmem %s0, %s113
        %v115 = vld [vmem:[%s114] sm:$0xff]
        %v116 = vld [vmem:[%s114 + $0x8] sm:$0xff]
        %v117 = vld [vmem:[%s114 + $0x10] sm:$0xff]
        %v118 = vld [vmem:[%s114 + $0x18] sm:$0xff]
        %v119 = vld [vmem:[%s114 + $0x20] sm:$0xff]
        %v120 = vld [vmem:[%s114 + $0x28] sm:$0xff]
        %v121 = vld [vmem:[%s114 + $0x30] sm:$0xff]
        %v122 = vld [vmem:[%s114 + $0x38] sm:$0xff]
        %v123 = vld [vmem:[%s114 + $0x40] sm:$0xff]
        %v124 = vld [vmem:[%s114 + $0x48] sm:$0xff]
        %v125 = vld [vmem:[%s114 + $0x50] sm:$0xff]
        %v126 = vld [vmem:[%s114 + $0x58] sm:$0xff]
        %v127 = vld [vmem:[%s114 + $0x60] sm:$0xff]
        %v128 = vld [vmem:[%s114 + $0x68] sm:$0xff]
        %v129 = vld [vmem:[%s114 + $0x70] sm:$0xff]
        %v130 = vld [vmem:[%s114 + $0x78] sm:$0xff]
        %139 = vrot.lane.b32.xlu0 %v123, 64
        %v140 = vpop.permute.xlu0 %139
        %141 = vrot.lane.b32.xlu0 %v124, 64
        %v142 = vpop.permute.xlu0 %141
        %143 = vrot.lane.b32.xlu0 %v125, 64
        %v144 = vpop.permute.xlu0 %143
        %145 = vrot.lane.b32.xlu0 %v126, 64
        %v146 = vpop.permute.xlu0 %145
        %147 = vrot.lane.b32.xlu0 %v127, 64
        %v148 = vpop.permute.xlu0 %147
        %149 = vrot.lane.b32.xlu0 %v128, 64
        %v150 = vpop.permute.xlu0 %149
        %151 = vrot.lane.b32.xlu0 %v129, 64
        %v152 = vpop.permute.xlu0 %151
        %153 = vrot.lane.b32.xlu0 %v130, 64
        %v154 = vpop.permute.xlu0 %153
        %vm163 = vcmask 523264
        %v164 = vsel %vm163, %v115, %v140
        %v165 = vsel %vm163, %v116, %v142
        %v166 = vsel %vm163, %v117, %v144
        %v167 = vsel %vm163, %v118, %v146
        %v168 = vsel %vm163, %v119, %v148
        %v169 = vsel %vm163, %v120, %v150
        %v170 = vsel %vm163, %v121, %v152
        %v171 = vsel %vm163, %v122, %v154
        %172 = vst [vmem:[%s109] sm:$0xff] %v164
        %173 = vst [vmem:[%s109 + $0x8] sm:$0xff] %v165
        %174 = vst [vmem:[%s109 + $0x10] sm:$0xff] %v166
        %175 = vst [vmem:[%s109 + $0x18] sm:$0xff] %v167
        %176 = vst [vmem:[%s109 + $0x20] sm:$0xff] %v168
        %177 = vst [vmem:[%s109 + $0x28] sm:$0xff] %v169
        %178 = vst [vmem:[%s109 + $0x30] sm:$0xff] %v170
        %179 = vst [vmem:[%s109 + $0x38] sm:$0xff] %v171
        %s180 = sand.u32 %s49, 1
        %s181 = scalar_lea.sflag [#allocation3], %s180
        %s182 = sand.u32 %s49, 1
        %s183 = smul.addr %s182, 64
        %s184 = scalar_lea.vmem [#allocation2], %s183
        // Predicated region
        $region25: #{eegnet_forward.1} parent=23 // pred_check
          %p185 = pneg %p59
        $region26: #{eegnet_forward.1} parent=23 // pred_check_branch
          %187 = sbr.rel (%p185) target = $region28
        $region27: #{eegnet_forward.1} parent=23 // pred_region
          %s189 = ssub.s32 1024, 1024
          %190 = vsyncadd %s181, %s189
          %s191 = smul.addr %s15, 8
          %s192 = smul.addr %s191, 128
          %s193 = scalar_lea.hbm %s1, %s192
          %s194 = sshll.u32 %s184, 4
          %s195 = int_to_ptr.vmem [resolvable:$true] %s194
          %200 = dma.vmem_to_hbm [thread:$0]  %s195, 1024, %s193, %s181, 128, 128, 8
        $region28: #{eegnet_forward.1} parent=23 // pred_fallthru
          _
      $region24: #{eegnet_forward.1} parent=5 // pred_fallthru
        _
      %p201 = scmp.le.s32.totalorder 2, %s10
      // Predicated region
      $region29: #{eegnet_forward.1} parent=5 // pred_check
        %p202 = pneg %p201
      $region30: #{eegnet_forward.1} parent=5 // pred_check_branch
        %204 = sbr.rel (%p202) target = $region32
      $region31: #{eegnet_forward.1} parent=5 // pred_region
        %s205 = ssub.s32 %s10, 2
        // Predicated region
        $region33: #{eegnet_forward.1} parent=31 // pred_check
          %p206 = pneg %p65
        $region34: #{eegnet_forward.1} parent=31 // pred_check_branch
          %208 = sbr.rel (%p206) target = $region36
        $region35: #{eegnet_forward.1} parent=31 // pred_region
          %s209 = sand.u32 %s50, 1
          %s210 = scalar_lea.sflag [#allocation3], %s209
          %s211 = sand.u32 %s50, 1
          %s212 = smul.addr %s211, 64
          %s213 = scalar_lea.vmem [#allocation2], %s212
          %214 = dma.done %s210, 1024
        $region36: #{eegnet_forward.1} parent=31 // pred_fallthru
          _
      $region32: #{eegnet_forward.1} parent=5 // pred_fallthru
        _
    $region6: #{eegnet_forward.1} parent=1 // loop_footer
      %s14 = sadd.s32 1, %s10
    $region7: #{eegnet_forward.1} parent=1 // loop_footer_branch
      %9 = sbr.rel target = $region3
    $region8: #{eegnet_forward.1} parent=1 // loop_exit
      _
    %215 = vsyncpa [#allocation3], 1
    %s216 = scalar_lea.sflag [#allocation3], 1
    %217 = vsyncpa %s216, 1

</llo_original>
